<compile_context>
chip_gen: v6e
topology: v6e:2x2x1
jax: 0.10.0
libtpu: 0.0.40
codegen_flags: <defaults>
</compile_context>

<pallas_src>
import functools

import jax
import jax.numpy as jnp
from jax.experimental import pallas as pl
from jax.experimental.pallas import tpu as pltpu

# Small analogues of the module's globals (original: hidden_dim=1024,
# in_dim=68*68=4624, latent_dim=64).
HIDDEN_DIM = 128
IN_DIM = 16 * 16          # "68*68" analogue
LATENT_DIM = 64

_COMPUTE_DTYPE = jnp.bfloat16   # MXU input dtype; accumulate in f32


def _round_up(x, m):
    return (x + m - 1) // m * m


# ----------------------------- fused kernel --------------------------------

def _cvae_fused_kernel(fc_ref, sc_ref, eps_ref,
                       w1f_ref, w1s_ref, b1_ref,
                       w2_ref, b2_ref,
                       wml_ref, bml_ref,
                       w3z_ref, w3f_ref, b3_ref,
                       w4_ref, b4_ref,
                       wo_ref, bo_ref,
                       recon_ref, mulogvar_ref, *, latent_dim):
    f32 = jnp.float32
    cdt = w1f_ref.dtype
    fc = fc_ref[...]
    sc = sc_ref[...]

    # ---- encoder -----------------------------------------------------------
    # fc1 over concat([fc, sc]): W1 split by input rows -> two MXU pushes.
    h = jnp.dot(fc, w1f_ref[...], preferred_element_type=f32)
    h = h + jnp.dot(sc, w1s_ref[...], preferred_element_type=f32)
    h = jnp.maximum(h + b1_ref[...], 0.0).astype(cdt)

    h = jnp.dot(h, w2_ref[...], preferred_element_type=f32) + b2_ref[...]
    h = jnp.maximum(h, 0.0).astype(cdt)

    # fused [mu | logvar] head: one lane-dense (2*latent)-wide matmul.
    ml = jnp.dot(h, wml_ref[...], preferred_element_type=f32) + bml_ref[...]
    mulogvar_ref[...] = ml.astype(mulogvar_ref.dtype)   # 128-lane dense store
    mu = ml[:, :latent_dim]
    logvar = ml[:, latent_dim:]

    # ---- reparameterize: z = mu + eps * exp(0.5 * logvar) (exp -> EUP) -----
    z = (mu + eps_ref[...].astype(f32) * jnp.exp(0.5 * logvar)).astype(cdt)

    # ---- decoder -----------------------------------------------------------
    # fc3 over concat([z, fc]): W3 split by input rows.
    h = jnp.dot(z, w3z_ref[...], preferred_element_type=f32)
    h = h + jnp.dot(fc, w3f_ref[...], preferred_element_type=f32)
    h = jnp.maximum(h + b3_ref[...], 0.0).astype(cdt)

    h = jnp.dot(h, w4_ref[...], preferred_element_type=f32) + b4_ref[...]
    h = jnp.maximum(h, 0.0).astype(cdt)

    out = jnp.dot(h, wo_ref[...], preferred_element_type=f32) + bo_ref[...]
    recon_ref[...] = jax.nn.sigmoid(out).astype(recon_ref.dtype)


# ------------------------------ Parameters ---------------------------------

def _uniform(key, shape, bound):
    return jax.random.uniform(key, shape, jnp.float32, -bound, bound)


def init_cvae_params(key, in_dim=IN_DIM, latent_dim=LATENT_DIM,
                     hidden_dim=HIDDEN_DIM, dtype=_COMPUTE_DTYPE):
    """PyTorch nn.Linear-style init, pre-arranged for the fused kernel."""
    ks = jax.random.split(key, 14)

    def lin(kw, kb, fan_in, fan_out):
        bound = 1.0 / float(fan_in) ** 0.5
        return (_uniform(kw, (fan_in, fan_out), bound),
                _uniform(kb, (1, fan_out), bound))

    w1, b1 = lin(ks[0], ks[1], in_dim * 2, hidden_dim)
    w2, b2 = lin(ks[2], ks[3], hidden_dim, hidden_dim)
    wmu, bmu = lin(ks[4], ks[5], hidden_dim, latent_dim)
    wlv, blv = lin(ks[6], ks[7], hidden_dim, latent_dim)
    w3, b3 = lin(ks[8], ks[9], latent_dim + in_dim, hidden_dim)
    w4, b4 = lin(ks[10], ks[11], hidden_dim, hidden_dim)
    wo, bo = lin(ks[12], ks[13], hidden_dim, in_dim)

    return {
        # fc1 split by rows: concat([fc, sc]) @ W1 == fc@W1[:in] + sc@W1[in:]
        "w1_fc": w1[:in_dim].astype(dtype),
        "w1_sc": w1[in_dim:].astype(dtype),
        "b1": b1,                                  # biases stay f32, (1, N)
        "w2": w2.astype(dtype), "b2": b2,
        # fused [mu | logvar] head -> lane-dense 2*latent output
        "w_ml": jnp.concatenate([wmu, wlv], axis=1).astype(dtype),
        "b_ml": jnp.concatenate([bmu, blv], axis=1),
        # fc3 split by rows: concat([z, fc]) @ W3 == z@W3[:lat] + fc@W3[lat:]
        "w3_z": w3[:latent_dim].astype(dtype),
        "w3_fc": w3[latent_dim:].astype(dtype),
        "b3": b3,
        "w4": w4.astype(dtype), "b4": b4,
        "w_out": wo.astype(dtype), "b_out": bo,
    }


# ------------------------------- Forward -----------------------------------

def cvae_forward(params, fc, sc, eps):
    batch, in_dim = fc.shape
    latent_dim = eps.shape[1]
    cdt = _COMPUTE_DTYPE

    # Pad batch rows to bf16 sublane granularity (16) for dense vregs/stores.
    m_pad = _round_up(max(batch, 1), 16)

    def pad_rows(x):
        xp = jnp.zeros((m_pad, x.shape[1]), cdt)
        return xp.at[:batch].set(x.astype(cdt))

    fc_p, sc_p, eps_p = pad_rows(fc), pad_rows(sc), pad_rows(eps)

    flat = (params["w1_fc"], params["w1_sc"], params["b1"],
            params["w2"], params["b2"],
            params["w_ml"], params["b_ml"],
            params["w3_z"], params["w3_fc"], params["b3"],
            params["w4"], params["b4"],
            params["w_out"], params["b_out"])

    vmem = pl.BlockSpec(memory_space=pltpu.MemorySpace.VMEM)
    kernel = functools.partial(_cvae_fused_kernel, latent_dim=latent_dim)

    recon, mulogvar = pl.pallas_call(
        kernel,
        out_shape=(jax.ShapeDtypeStruct((m_pad, in_dim), jnp.float32),
                   jax.ShapeDtypeStruct((m_pad, 2 * latent_dim), jnp.float32)),
        in_specs=[vmem] * (3 + len(flat)),
        out_specs=(vmem, vmem),
    )(fc_p, sc_p, eps_p, *flat)

    recon_sc = recon[:batch]
    mu = mulogvar[:batch, :latent_dim]
    logvar = mulogvar[:batch, latent_dim:]
    return recon_sc, mu, logvar


# --------------------------- Pure-JAX reference ------------------------------

def cvae_reference(params, fc, sc, eps):
    """Mirror of the fused kernel (same dtypes/casts) for validation."""
    f32 = jnp.float32
    cdt = _COMPUTE_DTYPE
    latent_dim = eps.shape[1]
    fc_c, sc_c, eps_c = (a.astype(cdt) for a in (fc, sc, eps))

    def dot(a, b):
        return jnp.dot(a, b, preferred_element_type=f32)

    h = dot(fc_c, params["w1_fc"]) + dot(sc_c, params["w1_sc"]) + params["b1"]
    h = jnp.maximum(h, 0.0).astype(cdt)
    h = jnp.maximum(dot(h, params["w2"]) + params["b2"], 0.0).astype(cdt)
    ml = dot(h, params["w_ml"]) + params["b_ml"]
    mu, logvar = ml[:, :latent_dim], ml[:, latent_dim:]
    z = (mu + eps_c.astype(f32) * jnp.exp(0.5 * logvar)).astype(cdt)
    h = dot(z, params["w3_z"]) + dot(fc_c, params["w3_fc"]) + params["b3"]
    h = jnp.maximum(h, 0.0).astype(cdt)
    h = jnp.maximum(dot(h, params["w4"]) + params["b4"], 0.0).astype(cdt)
    recon = jax.nn.sigmoid(dot(h, params["w_out"]) + params["b_out"])
    return recon, mu, logvar


# --------------------------------- Main -------------------------------------

if __name__ == "__main__":
    key = jax.random.PRNGKey(0)
    k_params, k_fc, k_sc, k_eps = jax.random.split(key, 4)

    params = init_cvae_params(k_params)

    batch = 2
    fc = jax.random.uniform(k_fc, (batch, IN_DIM), jnp.float32)
    sc = jax.random.uniform(k_sc, (batch, IN_DIM), jnp.float32)
    # eps ~ N(0,1) generated outside the kernel (torch.randn_like analogue).
    eps = jax.random.normal(k_eps, (batch, LATENT_DIM), jnp.float32)

    recon_sc, mu, logvar = jax.jit(cvae_forward)(params, fc, sc, eps)
    jax.block_until_ready((recon_sc, mu, logvar))

    assert recon_sc.shape == (batch, IN_DIM)
    assert mu.shape == (batch, LATENT_DIM)
    assert logvar.shape == (batch, LATENT_DIM)

    r_recon, r_mu, r_logvar = jax.jit(cvae_reference)(params, fc, sc, eps)
    assert bool(jnp.isfinite(recon_sc).all())
    assert jnp.allclose(recon_sc, r_recon, atol=2e-2, rtol=2e-2)
    assert jnp.allclose(mu, r_mu, atol=2e-2, rtol=2e-2)
    assert jnp.allclose(logvar, r_logvar, atol=2e-2, rtol=2e-2)

    print("KERNEL_OK")
</pallas_src>

<mosaic_0001>
module attributes {stable_mosaic.version = 11 : i64} {
  func.func @_cvae_fused_kernel(%arg0: memref<16x256xbf16, #tpu.memory_space<vmem>>, %arg1: memref<16x256xbf16, #tpu.memory_space<vmem>>, %arg2: memref<16x64xbf16, #tpu.memory_space<vmem>>, %arg3: memref<256x128xbf16, #tpu.memory_space<vmem>>, %arg4: memref<256x128xbf16, #tpu.memory_space<vmem>>, %arg5: memref<1x128xf32, #tpu.memory_space<vmem>>, %arg6: memref<128x128xbf16, #tpu.memory_space<vmem>>, %arg7: memref<1x128xf32, #tpu.memory_space<vmem>>, %arg8: memref<128x128xbf16, #tpu.memory_space<vmem>>, %arg9: memref<1x128xf32, #tpu.memory_space<vmem>>, %arg10: memref<64x128xbf16, #tpu.memory_space<vmem>>, %arg11: memref<256x128xbf16, #tpu.memory_space<vmem>>, %arg12: memref<1x128xf32, #tpu.memory_space<vmem>>, %arg13: memref<128x128xbf16, #tpu.memory_space<vmem>>, %arg14: memref<1x128xf32, #tpu.memory_space<vmem>>, %arg15: memref<128x256xbf16, #tpu.memory_space<vmem>>, %arg16: memref<1x256xf32, #tpu.memory_space<vmem>>, %arg17: memref<16x256xf32, #tpu.memory_space<vmem>>, %arg18: memref<16x128xf32, #tpu.memory_space<vmem>>) attributes {dimension_semantics = [], scalar_prefetch = 0 : i64, scratch_operands = 0 : i64, tpu.core_type = #tpu.core_type<tc>} {
    %c0 = arith.constant 0 : index
    %c0_0 = arith.constant 0 : index
    %0 = vector.load %arg0[%c0, %c0_0] : memref<16x256xbf16, #tpu.memory_space<vmem>>, vector<16x256xbf16>
    %c0_1 = arith.constant 0 : index
    %c0_2 = arith.constant 0 : index
    %1 = vector.load %arg1[%c0_1, %c0_2] : memref<16x256xbf16, #tpu.memory_space<vmem>>, vector<16x256xbf16>
    %c0_3 = arith.constant 0 : index
    %c0_4 = arith.constant 0 : index
    %2 = vector.load %arg3[%c0_3, %c0_4] : memref<256x128xbf16, #tpu.memory_space<vmem>>, vector<256x128xbf16>
    %cst = arith.constant dense<0.000000e+00> : vector<16x128xf32>
    %3 = tpu.matmul %0, %2, %cst {dimension_numbers = #tpu.dot_dimension_numbers<[1], [0], [0], [1], [0, 0, 1, 1], [], []>} : vector<16x256xbf16>, vector<256x128xbf16>, vector<16x128xf32> -> vector<16x128xf32>
    %c0_5 = arith.constant 0 : index
    %c0_6 = arith.constant 0 : index
    %4 = vector.load %arg4[%c0_5, %c0_6] : memref<256x128xbf16, #tpu.memory_space<vmem>>, vector<256x128xbf16>
    %cst_7 = arith.constant dense<0.000000e+00> : vector<16x128xf32>
    %5 = tpu.matmul %1, %4, %cst_7 {dimension_numbers = #tpu.dot_dimension_numbers<[1], [0], [0], [1], [0, 0, 1, 1], [], []>} : vector<16x256xbf16>, vector<256x128xbf16>, vector<16x128xf32> -> vector<16x128xf32>
    %6 = arith.addf %3, %5 : vector<16x128xf32>
    %c0_8 = arith.constant 0 : index
    %c0_9 = arith.constant 0 : index
    %7 = vector.load %arg5[%c0_8, %c0_9] : memref<1x128xf32, #tpu.memory_space<vmem>>, vector<1x128xf32>
    %8 = vector.broadcast %7 : vector<1x128xf32> to vector<16x128xf32>
    %9 = arith.addf %6, %8 : vector<16x128xf32>
    %cst_10 = arith.constant 0.000000e+00 : f32
    %10 = vector.broadcast %cst_10 : f32 to vector<16x128xf32>
    %11 = arith.maximumf %9, %10 : vector<16x128xf32>
    %12 = arith.truncf %11 : vector<16x128xf32> to vector<16x128xbf16>
    %c0_11 = arith.constant 0 : index
    %c0_12 = arith.constant 0 : index
    %13 = vector.load %arg6[%c0_11, %c0_12] : memref<128x128xbf16, #tpu.memory_space<vmem>>, vector<128x128xbf16>
    %cst_13 = arith.constant dense<0.000000e+00> : vector<16x128xf32>
    %14 = tpu.matmul %12, %13, %cst_13 {dimension_numbers = #tpu.dot_dimension_numbers<[1], [0], [0], [1], [0, 0, 1, 1], [], []>} : vector<16x128xbf16>, vector<128x128xbf16>, vector<16x128xf32> -> vector<16x128xf32>
    %c0_14 = arith.constant 0 : index
    %c0_15 = arith.constant 0 : index
    %15 = vector.load %arg7[%c0_14, %c0_15] : memref<1x128xf32, #tpu.memory_space<vmem>>, vector<1x128xf32>
    %16 = vector.broadcast %15 : vector<1x128xf32> to vector<16x128xf32>
    %17 = arith.addf %14, %16 : vector<16x128xf32>
    %cst_16 = arith.constant 0.000000e+00 : f32
    %18 = vector.broadcast %cst_16 : f32 to vector<16x128xf32>
    %19 = arith.maximumf %17, %18 : vector<16x128xf32>
    %20 = arith.truncf %19 : vector<16x128xf32> to vector<16x128xbf16>
    %c0_17 = arith.constant 0 : index
    %c0_18 = arith.constant 0 : index
    %21 = vector.load %arg8[%c0_17, %c0_18] : memref<128x128xbf16, #tpu.memory_space<vmem>>, vector<128x128xbf16>
    %cst_19 = arith.constant dense<0.000000e+00> : vector<16x128xf32>
    %22 = tpu.matmul %20, %21, %cst_19 {dimension_numbers = #tpu.dot_dimension_numbers<[1], [0], [0], [1], [0, 0, 1, 1], [], []>} : vector<16x128xbf16>, vector<128x128xbf16>, vector<16x128xf32> -> vector<16x128xf32>
    %c0_20 = arith.constant 0 : index
    %c0_21 = arith.constant 0 : index
    %23 = vector.load %arg9[%c0_20, %c0_21] : memref<1x128xf32, #tpu.memory_space<vmem>>, vector<1x128xf32>
    %24 = vector.broadcast %23 : vector<1x128xf32> to vector<16x128xf32>
    %25 = arith.addf %22, %24 : vector<16x128xf32>
    %c0_22 = arith.constant 0 : index
    %c0_23 = arith.constant 0 : index
    %26 = vector.load %arg18[%c0_22, %c0_23] : memref<16x128xf32, #tpu.memory_space<vmem>>, vector<16x128xf32>
    tpu.vector_store %arg18[%c0_22, %c0_23], %25 {strides = array<i32>} : memref<16x128xf32, #tpu.memory_space<vmem>>, vector<16x128xf32>,
    %27 = vector.extract_strided_slice %25 {offsets = [0, 0], sizes = [16, 64], strides = [1, 1]} : vector<16x128xf32> to vector<16x64xf32>
    %28 = vector.extract_strided_slice %25 {offsets = [0, 64], sizes = [16, 64], strides = [1, 1]} : vector<16x128xf32> to vector<16x64xf32>
    %c0_24 = arith.constant 0 : index
    %c0_25 = arith.constant 0 : index
    %29 = vector.load %arg2[%c0_24, %c0_25] : memref<16x64xbf16, #tpu.memory_space<vmem>>, vector<16x64xbf16>
    %30 = arith.extf %29 : vector<16x64xbf16> to vector<16x64xf32>
    %cst_26 = arith.constant 5.000000e-01 : f32
    %31 = vector.broadcast %cst_26 : f32 to vector<16x64xf32>
    %32 = arith.mulf %31, %28 : vector<16x64xf32>
    %33 = math.exp %32 : vector<16x64xf32>
    %34 = arith.mulf %30, %33 : vector<16x64xf32>
    %35 = arith.addf %27, %34 : vector<16x64xf32>
    %36 = arith.truncf %35 : vector<16x64xf32> to vector<16x64xbf16>
    %c0_27 = arith.constant 0 : index
    %c0_28 = arith.constant 0 : index
    %37 = vector.load %arg10[%c0_27, %c0_28] : memref<64x128xbf16, #tpu.memory_space<vmem>>, vector<64x128xbf16>
    %cst_29 = arith.constant dense<0.000000e+00> : vector<16x128xf32>
    %38 = tpu.matmul %36, %37, %cst_29 {dimension_numbers = #tpu.dot_dimension_numbers<[1], [0], [0], [1], [0, 0, 1, 1], [], []>} : vector<16x64xbf16>, vector<64x128xbf16>, vector<16x128xf32> -> vector<16x128xf32>
    %c0_30 = arith.constant 0 : index
    %c0_31 = arith.constant 0 : index
    %39 = vector.load %arg11[%c0_30, %c0_31] : memref<256x128xbf16, #tpu.memory_space<vmem>>, vector<256x128xbf16>
    %cst_32 = arith.constant dense<0.000000e+00> : vector<16x128xf32>
    %40 = tpu.matmul %0, %39, %cst_32 {dimension_numbers = #tpu.dot_dimension_numbers<[1], [0], [0], [1], [0, 0, 1, 1], [], []>} : vector<16x256xbf16>, vector<256x128xbf16>, vector<16x128xf32> -> vector<16x128xf32>
    %41 = arith.addf %38, %40 : vector<16x128xf32>
    %c0_33 = arith.constant 0 : index
    %c0_34 = arith.constant 0 : index
    %42 = vector.load %arg12[%c0_33, %c0_34] : memref<1x128xf32, #tpu.memory_space<vmem>>, vector<1x128xf32>
    %43 = vector.broadcast %42 : vector<1x128xf32> to vector<16x128xf32>
    %44 = arith.addf %41, %43 : vector<16x128xf32>
    %cst_35 = arith.constant 0.000000e+00 : f32
    %45 = vector.broadcast %cst_35 : f32 to vector<16x128xf32>
    %46 = arith.maximumf %44, %45 : vector<16x128xf32>
    %47 = arith.truncf %46 : vector<16x128xf32> to vector<16x128xbf16>
    %c0_36 = arith.constant 0 : index
    %c0_37 = arith.constant 0 : index
    %48 = vector.load %arg13[%c0_36, %c0_37] : memref<128x128xbf16, #tpu.memory_space<vmem>>, vector<128x128xbf16>
    %cst_38 = arith.constant dense<0.000000e+00> : vector<16x128xf32>
    %49 = tpu.matmul %47, %48, %cst_38 {dimension_numbers = #tpu.dot_dimension_numbers<[1], [0], [0], [1], [0, 0, 1, 1], [], []>} : vector<16x128xbf16>, vector<128x128xbf16>, vector<16x128xf32> -> vector<16x128xf32>
    %c0_39 = arith.constant 0 : index
    %c0_40 = arith.constant 0 : index
    %50 = vector.load %arg14[%c0_39, %c0_40] : memref<1x128xf32, #tpu.memory_space<vmem>>, vector<1x128xf32>
    %51 = vector.broadcast %50 : vector<1x128xf32> to vector<16x128xf32>
    %52 = arith.addf %49, %51 : vector<16x128xf32>
    %cst_41 = arith.constant 0.000000e+00 : f32
    %53 = vector.broadcast %cst_41 : f32 to vector<16x128xf32>
    %54 = arith.maximumf %52, %53 : vector<16x128xf32>
    %55 = arith.truncf %54 : vector<16x128xf32> to vector<16x128xbf16>
    %c0_42 = arith.constant 0 : index
    %c0_43 = arith.constant 0 : index
    %56 = vector.load %arg15[%c0_42, %c0_43] : memref<128x256xbf16, #tpu.memory_space<vmem>>, vector<128x256xbf16>
    %cst_44 = arith.constant dense<0.000000e+00> : vector<16x256xf32>
    %57 = tpu.matmul %55, %56, %cst_44 {dimension_numbers = #tpu.dot_dimension_numbers<[1], [0], [0], [1], [0, 0, 1, 1], [], []>} : vector<16x128xbf16>, vector<128x256xbf16>, vector<16x256xf32> -> vector<16x256xf32>
    %c0_45 = arith.constant 0 : index
    %c0_46 = arith.constant 0 : index
    %58 = vector.load %arg16[%c0_45, %c0_46] : memref<1x256xf32, #tpu.memory_space<vmem>>, vector<1x256xf32>
    %59 = vector.broadcast %58 : vector<1x256xf32> to vector<16x256xf32>
    %60 = arith.addf %57, %59 : vector<16x256xf32>
    %61 = arith.negf %60 : vector<16x256xf32>
    %62 = math.exp %61 : vector<16x256xf32>
    %cst_47 = arith.constant 1.000000e+00 : f32
    %63 = vector.broadcast %cst_47 : f32 to vector<16x256xf32>
    %64 = arith.addf %63, %62 : vector<16x256xf32>
    %65 = arith.divf %63, %64 : vector<16x256xf32>
    %c0_48 = arith.constant 0 : index
    %c0_49 = arith.constant 0 : index
    %66 = vector.load %arg17[%c0_48, %c0_49] : memref<16x256xf32, #tpu.memory_space<vmem>>, vector<16x256xf32>
    tpu.vector_store %arg17[%c0_48, %c0_49], %65 {strides = array<i32>} : memref<16x256xf32, #tpu.memory_space<vmem>>, vector<16x256xf32>,
    return
  }
}

</mosaic_0001>

<llo_original>
// kernel: cvae_forward.1
$region0: #{cvae_forward.1}
  #allocation0 [shape = 'u32[]', space=smem, size = 0x4, offset = 0x4, fixed_abs, tag = 'smem constant byte address 0x4 - core index']
  #allocation1 [shape = 'u32[144,128]{1,0:T(1,128)}', space=vmem, size = 0x12000, scoped, tag = 'internal scratch']
  %s0 = inlined_call_operand.vmem [shape: bf16[16,256], index: 0, kind: input, shape index: {}]
  %s1 = inlined_call_operand.vmem [shape: bf16[16,256], index: 1, kind: input, shape index: {}]
  %s2 = inlined_call_operand.vmem [shape: bf16[16,64], index: 2, kind: input, shape index: {}]
  %s3 = inlined_call_operand.hbm [shape: bf16[256,128], index: 3, kind: input, shape index: {}]
  %s4 = inlined_call_operand.hbm [shape: bf16[256,128], index: 4, kind: input, shape index: {}]
  %s5 = inlined_call_operand.vmem [shape: f32[1,128], index: 5, kind: input, shape index: {}]
  %s6 = inlined_call_operand.vmem [shape: bf16[128,128], index: 6, kind: input, shape index: {}]
  %s7 = inlined_call_operand.vmem [shape: f32[1,128], index: 7, kind: input, shape index: {}]
  %s8 = inlined_call_operand.hbm [shape: bf16[128,128], index: 8, kind: input, shape index: {}]
  %s9 = inlined_call_operand.vmem [shape: f32[1,128], index: 9, kind: input, shape index: {}]
  %s10 = inlined_call_operand.hbm [shape: bf16[64,128], index: 10, kind: input, shape index: {}]
  %s11 = inlined_call_operand.hbm [shape: bf16[256,128], index: 11, kind: input, shape index: {}]
  %s12 = inlined_call_operand.hbm [shape: f32[1,128], index: 12, kind: input, shape index: {}]
  %s13 = inlined_call_operand.hbm [shape: bf16[128,128], index: 13, kind: input, shape index: {}]
  %s14 = inlined_call_operand.hbm [shape: f32[1,128], index: 14, kind: input, shape index: {}]
  %s15 = inlined_call_operand.hbm [shape: bf16[128,256], index: 15, kind: input, shape index: {}]
  %s16 = inlined_call_operand.vmem [shape: f32[1,256], index: 16, kind: input, shape index: {}]
  %s17 = inlined_call_operand.vmem [shape: f32[16,256], index: 17, kind: output, shape index: {0}]
  %s18 = inlined_call_operand.vmem [shape: f32[16,128], index: 18, kind: output, shape index: {1}]
  %19 = xla_tuple %s17, %s18
  %s20 = sld [smem:[#allocation0]]
  $region122: #{cvae_forward.1} parent=0
    _
  %s22 = ssub.s32 1, %s20
  %s23 = scalar_select 0, %s22, %s20
  $region1: #{cvae_forward.1} parent=0
    #allocation2 [shape = 'u8[65536]{0}', space=vmem, size = 0x10000, scoped, tag = 'input window, operand 3, single buffered']
    #allocation3 [shape = 's32[1]{0}', space=sflag, size = 0x4, scoped, tag = 'scoped memory for cvae_forward.1']
    #allocation4 [shape = 'u8[65536]{0}', space=vmem, size = 0x10000, scoped, tag = 'input window, operand 4, single buffered']
    #allocation5 [shape = 's32[1]{0}', space=sflag, size = 0x4, scoped, tag = 'scoped memory for cvae_forward.1']
    #allocation6 [shape = 'u8[32768]{0}', space=vmem, size = 0x8000, scoped, tag = 'input window, operand 8, single buffered']
    #allocation7 [shape = 'u8[16384]{0}', space=vmem, size = 0x4000, scoped, tag = 'input window, operand 10, single buffered']
    #allocation8 [shape = 's32[1]{0}', space=sflag, size = 0x4, scoped, tag = 'scoped memory for cvae_forward.1']
    #allocation9 [shape = 'u8[65536]{0}', space=vmem, size = 0x10000, scoped, tag = 'input window, operand 11, single buffered']
    #allocation10 [shape = 'u8[512]{0}', space=vmem, size = 0x400, scoped, tag = 'input window, operand 12, single buffered']
    #allocation11 [shape = 's32[1]{0}', space=sflag, size = 0x4, scoped, tag = 'scoped memory for cvae_forward.1']
    #allocation12 [shape = 'u8[32768]{0}', space=vmem, size = 0x8000, scoped, tag = 'input window, operand 13, single buffered']
    #allocation13 [shape = 'u8[512]{0}', space=vmem, size = 0x400, scoped, tag = 'input window, operand 14, single buffered']
    #allocation14 [shape = 's32[1]{0}', space=sflag, size = 0x4, scoped, tag = 'scoped memory for cvae_forward.1']
    #allocation15 [shape = 'u8[65536]{0}', space=vmem, size = 0x10000, scoped, tag = 'input window, operand 15, single buffered']
    %24 = vsyncpa [#allocation3], 0
    %25 = vsyncpa [#allocation5], 0
    %26 = vsyncpa [#allocation8], 0
    %27 = vsyncpa [#allocation11], 0
    %28 = vsyncpa [#allocation14], 0
    // Predicated region
    $region2: #{cvae_forward.1} parent=1 // pred_check
      _
    $region3: #{cvae_forward.1} parent=1 // pred_check_branch
      %30 = sbr.rel (0) target = $region5
    $region4: #{cvae_forward.1} parent=1 // pred_region
      _
    $region5: #{cvae_forward.1} parent=1 // pred_fallthru
      _
    // Predicated region
    $region6: #{cvae_forward.1} parent=1 // pred_check
      _
    $region7: #{cvae_forward.1} parent=1 // pred_check_branch
      %32 = sbr.rel (0) target = $region9
    $region8: #{cvae_forward.1} parent=1 // pred_region
      _
    $region9: #{cvae_forward.1} parent=1 // pred_fallthru
      _
    // Predicated region
    $region10: #{cvae_forward.1} parent=1 // pred_check
      _
    $region11: #{cvae_forward.1} parent=1 // pred_check_branch
      %34 = sbr.rel (0) target = $region13
    $region12: #{cvae_forward.1} parent=1 // pred_region
      _
    $region13: #{cvae_forward.1} parent=1 // pred_fallthru
      _
    // Predicated region
    $region14: #{cvae_forward.1} parent=1 // pred_check
      _
    $region15: #{cvae_forward.1} parent=1 // pred_check_branch
      %36 = sbr.rel (0) target = $region17
    $region16: #{cvae_forward.1} parent=1 // pred_region
      %s38 = ssub.s32 2048, 2048
      %39 = vsyncadd [#allocation3], %s38
      %s40 = sshll.u32 [#allocation2], 4
      %s41 = int_to_ptr.vmem [resolvable:$true] %s40
      %46 = dma.hbm_to_vmem [thread:$0]  %s3, 2048, %s41, [#allocation3], 64, 64, 4
    $region17: #{cvae_forward.1} parent=1 // pred_fallthru
      _
    // Predicated region
    $region18: #{cvae_forward.1} parent=1 // pred_check
      _
    $region19: #{cvae_forward.1} parent=1 // pred_check_branch
      %48 = sbr.rel (0) target = $region21
    $region20: #{cvae_forward.1} parent=1 // pred_region
      %s50 = ssub.s32 2048, 2048
      %51 = vsyncadd [#allocation5], %s50
      %s52 = sshll.u32 [#allocation4], 4
      %s53 = int_to_ptr.vmem [resolvable:$true] %s52
      %58 = dma.hbm_to_vmem [thread:$0]  %s4, 2048, %s53, [#allocation5], 64, 64, 4
    $region21: #{cvae_forward.1} parent=1 // pred_fallthru
      _
    // Predicated region
    $region22: #{cvae_forward.1} parent=1 // pred_check
      _
    $region23: #{cvae_forward.1} parent=1 // pred_check_branch
      %60 = sbr.rel (0) target = $region25
    $region24: #{cvae_forward.1} parent=1 // pred_region
      _
    $region25: #{cvae_forward.1} parent=1 // pred_fallthru
      _
    // Predicated region
    $region26: #{cvae_forward.1} parent=1 // pred_check
      _
    $region27: #{cvae_forward.1} parent=1 // pred_check_branch
      %62 = sbr.rel (0) target = $region29
    $region28: #{cvae_forward.1} parent=1 // pred_region
      _
    $region29: #{cvae_forward.1} parent=1 // pred_fallthru
      _
    // Predicated region
    $region30: #{cvae_forward.1} parent=1 // pred_check
      _
    $region31: #{cvae_forward.1} parent=1 // pred_check_branch
      %64 = sbr.rel (0) target = $region33
    $region32: #{cvae_forward.1} parent=1 // pred_region
      _
    $region33: #{cvae_forward.1} parent=1 // pred_fallthru
      _
    // Predicated region
    $region34: #{cvae_forward.1} parent=1 // pred_check
      _
    $region35: #{cvae_forward.1} parent=1 // pred_check_branch
      %66 = sbr.rel (0) target = $region37
    $region36: #{cvae_forward.1} parent=1 // pred_region
      %s68 = ssub.s32 1024, 1024
      %69 = vsyncadd [#allocation5], %s68
      %s70 = sshll.u32 [#allocation6], 4
      %s71 = int_to_ptr.vmem [resolvable:$true] %s70
      %76 = dma.hbm_to_vmem [thread:$0]  %s8, 1024, %s71, [#allocation5], 64, 64, 4
    $region37: #{cvae_forward.1} parent=1 // pred_fallthru
      _
    // Predicated region
    $region38: #{cvae_forward.1} parent=1 // pred_check
      _
    $region39: #{cvae_forward.1} parent=1 // pred_check_branch
      %78 = sbr.rel (0) target = $region41
    $region40: #{cvae_forward.1} parent=1 // pred_region
      _
    $region41: #{cvae_forward.1} parent=1 // pred_fallthru
      _
    // Predicated region
    $region42: #{cvae_forward.1} parent=1 // pred_check
      _
    $region43: #{cvae_forward.1} parent=1 // pred_check_branch
      %80 = sbr.rel (0) target = $region45
    $region44: #{cvae_forward.1} parent=1 // pred_region
      %s82 = ssub.s32 512, 512
      %83 = vsyncadd [#allocation8], %s82
      %s84 = sshll.u32 [#allocation7], 4
      %s85 = int_to_ptr.vmem [resolvable:$true] %s84
      %90 = dma.hbm_to_vmem [thread:$0]  %s10, 512, %s85, [#allocation8], 64, 64, 4
    $region45: #{cvae_forward.1} parent=1 // pred_fallthru
      _
    // Predicated region
    $region46: #{cvae_forward.1} parent=1 // pred_check
      _
    $region47: #{cvae_forward.1} parent=1 // pred_check_branch
      %92 = sbr.rel (0) target = $region49
    $region48: #{cvae_forward.1} parent=1 // pred_region
      %s94 = ssub.s32 2048, 2048
      %95 = vsyncadd [#allocation8], %s94
      %s96 = sshll.u32 [#allocation9], 4
      %s97 = int_to_ptr.vmem [resolvable:$true] %s96
      %102 = dma.hbm_to_vmem [thread:$0]  %s11, 2048, %s97, [#allocation8], 64, 64, 4
    $region49: #{cvae_forward.1} parent=1 // pred_fallthru
      _
    // Predicated region
    $region50: #{cvae_forward.1} parent=1 // pred_check
      _
    $region51: #{cvae_forward.1} parent=1 // pred_check_branch
      %104 = sbr.rel (0) target = $region53
    $region52: #{cvae_forward.1} parent=1 // pred_region
      %s106 = ssub.s32 16, 16
      %107 = vsyncadd [#allocation11], %s106
      %s109 = sshll.u32 [#allocation10], 4
      %s110 = int_to_ptr.vmem [resolvable:$true] %s109
      %112 = dma.hbm_to_vmem [thread:$0]  %s12, 16, %s110, [#allocation11]
    $region53: #{cvae_forward.1} parent=1 // pred_fallthru
      _
    // Predicated region
    $region54: #{cvae_forward.1} parent=1 // pred_check
      _
    $region55: #{cvae_forward.1} parent=1 // pred_check_branch
      %114 = sbr.rel (0) target = $region57
    $region56: #{cvae_forward.1} parent=1 // pred_region
      %s116 = ssub.s32 1024, 1024
      %117 = vsyncadd [#allocation11], %s116
      %s118 = sshll.u32 [#allocation12], 4
      %s119 = int_to_ptr.vmem [resolvable:$true] %s118
      %124 = dma.hbm_to_vmem [thread:$0]  %s13, 1024, %s119, [#allocation11], 64, 64, 4
    $region57: #{cvae_forward.1} parent=1 // pred_fallthru
      _
    // Predicated region
    $region58: #{cvae_forward.1} parent=1 // pred_check
      _
    $region59: #{cvae_forward.1} parent=1 // pred_check_branch
      %126 = sbr.rel (0) target = $region61
    $region60: #{cvae_forward.1} parent=1 // pred_region
      %s128 = ssub.s32 16, 16
      %129 = vsyncadd [#allocation14], %s128
      %s131 = sshll.u32 [#allocation13], 4
      %s132 = int_to_ptr.vmem [resolvable:$true] %s131
      %134 = dma.hbm_to_vmem [thread:$0]  %s14, 16, %s132, [#allocation14]
    $region61: #{cvae_forward.1} parent=1 // pred_fallthru
      _
    // Predicated region
    $region62: #{cvae_forward.1} parent=1 // pred_check
      _
    $region63: #{cvae_forward.1} parent=1 // pred_check_branch
      %136 = sbr.rel (0) target = $region65
    $region64: #{cvae_forward.1} parent=1 // pred_region
      %s138 = ssub.s32 2048, 2048
      %139 = vsyncadd [#allocation14], %s138
      %s140 = sshll.u32 [#allocation15], 4
      %s141 = int_to_ptr.vmem [resolvable:$true] %s140
      %146 = dma.hbm_to_vmem [thread:$0]  %s15, 2048, %s141, [#allocation14], 128, 128, 8
    $region65: #{cvae_forward.1} parent=1 // pred_fallthru
      _
    // Predicated region
    $region66: #{cvae_forward.1} parent=1 // pred_check
      _
    $region67: #{cvae_forward.1} parent=1 // pred_check_branch
      %148 = sbr.rel (0) target = $region69
    $region68: #{cvae_forward.1} parent=1 // pred_region
      _
    $region69: #{cvae_forward.1} parent=1 // pred_fallthru
      _
    // Predicated region
    $region70: #{cvae_forward.1} parent=1 // pred_check
      _
    $region71: #{cvae_forward.1} parent=1 // pred_check_branch
      %150 = sbr.rel (0) target = $region73
    $region72: #{cvae_forward.1} parent=1 // pred_region
      %151 = dma.done [#allocation3], 2048
    $region73: #{cvae_forward.1} parent=1 // pred_fallthru
      _
    // Predicated region
    $region74: #{cvae_forward.1} parent=1 // pred_check
      _
    $region75: #{cvae_forward.1} parent=1 // pred_check_branch
      %153 = sbr.rel (0) target = $region77
    $region76: #{cvae_forward.1} parent=1 // pred_region
      %154 = dma.done [#allocation5], 2048
    $region77: #{cvae_forward.1} parent=1 // pred_fallthru
      _
    // Predicated region
    $region78: #{cvae_forward.1} parent=1 // pred_check
      _
    $region79: #{cvae_forward.1} parent=1 // pred_check_branch
      %156 = sbr.rel (0) target = $region81
    $region80: #{cvae_forward.1} parent=1 // pred_region
      %157 = dma.done [#allocation5], 1024
    $region81: #{cvae_forward.1} parent=1 // pred_fallthru
      _
    // Predicated region
    $region82: #{cvae_forward.1} parent=1 // pred_check
      _
    $region83: #{cvae_forward.1} parent=1 // pred_check_branch
      %159 = sbr.rel (0) target = $region85
    $region84: #{cvae_forward.1} parent=1 // pred_region
      %160 = dma.done [#allocation8], 512
    $region85: #{cvae_forward.1} parent=1 // pred_fallthru
      _
    // Predicated region
    $region86: #{cvae_forward.1} parent=1 // pred_check
      _
    $region87: #{cvae_forward.1} parent=1 // pred_check_branch
      %162 = sbr.rel (0) target = $region89
    $region88: #{cvae_forward.1} parent=1 // pred_region
      %163 = dma.done [#allocation8], 2048
    $region89: #{cvae_forward.1} parent=1 // pred_fallthru
      _
    // Predicated region
    $region90: #{cvae_forward.1} parent=1 // pred_check
      _
    $region91: #{cvae_forward.1} parent=1 // pred_check_branch
      %165 = sbr.rel (0) target = $region93
    $region92: #{cvae_forward.1} parent=1 // pred_region
      %166 = dma.done [#allocation11], 16
    $region93: #{cvae_forward.1} parent=1 // pred_fallthru
      _
    // Predicated region
    $region94: #{cvae_forward.1} parent=1 // pred_check
      _
    $region95: #{cvae_forward.1} parent=1 // pred_check_branch
      %168 = sbr.rel (0) target = $region97
    $region96: #{cvae_forward.1} parent=1 // pred_region
      %169 = dma.done [#allocation11], 1024
    $region97: #{cvae_forward.1} parent=1 // pred_fallthru
      _
    // Predicated region
    $region98: #{cvae_forward.1} parent=1 // pred_check
      _
    $region99: #{cvae_forward.1} parent=1 // pred_check_branch
      %171 = sbr.rel (0) target = $region101
    $region100: #{cvae_forward.1} parent=1 // pred_region
      %172 = dma.done [#allocation14], 16
    $region101: #{cvae_forward.1} parent=1 // pred_fallthru
      _
    // Predicated region
    $region102: #{cvae_forward.1} parent=1 // pred_check
      _
    $region103: #{cvae_forward.1} parent=1 // pred_check_branch
      %174 = sbr.rel (0) target = $region105
    $region104: #{cvae_forward.1} parent=1 // pred_region
      %175 = dma.done [#allocation14], 2048
    $region105: #{cvae_forward.1} parent=1 // pred_fallthru
      _
    %v177 = vld [vmem:[%s0] sm:$0xff]
    %v178 = vld [vmem:[%s0 + $0x8] sm:$0xff]
    %v179 = vld [vmem:[%s1] sm:$0xff]
    %v180 = vld [vmem:[%s1 + $0x8] sm:$0xff]
    %v181 = vld [vmem:[#allocation2] sm:$0xf]
    %v182 = vld [vmem:[#allocation2 + $0x4] sm:$0xf]
    %v183 = vld [vmem:[#allocation2 + $0x8] sm:$0xf]
    %v184 = vld [vmem:[#allocation2 + $0xc] sm:$0xf]
    %v185 = vld [vmem:[#allocation2 + $0x10] sm:$0xf]
    %v186 = vld [vmem:[#allocation2 + $0x14] sm:$0xf]
    %v187 = vld [vmem:[#allocation2 + $0x18] sm:$0xf]
    %v188 = vld [vmem:[#allocation2 + $0x1c] sm:$0xf]
    %v189 = vld [vmem:[#allocation2 + $0x20] sm:$0xf]
    %v190 = vld [vmem:[#allocation2 + $0x24] sm:$0xf]
    %v191 = vld [vmem:[#allocation2 + $0x28] sm:$0xf]
    %v192 = vld [vmem:[#allocation2 + $0x2c] sm:$0xf]
    %v193 = vld [vmem:[#allocation2 + $0x30] sm:$0xf]
    %v194 = vld [vmem:[#allocation2 + $0x34] sm:$0xf]
    %v195 = vld [vmem:[#allocation2 + $0x38] sm:$0xf]
    %v196 = vld [vmem:[#allocation2 + $0x3c] sm:$0xf]
    %v197 = vld [vmem:[#allocation2 + $0x40] sm:$0xf]
    %v198 = vld [vmem:[#allocation2 + $0x44] sm:$0xf]
    %v199 = vld [vmem:[#allocation2 + $0x48] sm:$0xf]
    %v200 = vld [vmem:[#allocation2 + $0x4c] sm:$0xf]
    %v201 = vld [vmem:[#allocation2 + $0x50] sm:$0xf]
    %v202 = vld [vmem:[#allocation2 + $0x54] sm:$0xf]
    %v203 = vld [vmem:[#allocation2 + $0x58] sm:$0xf]
    %v204 = vld [vmem:[#allocation2 + $0x5c] sm:$0xf]
    %v205 = vld [vmem:[#allocation2 + $0x60] sm:$0xf]
    %v206 = vld [vmem:[#allocation2 + $0x64] sm:$0xf]
    %v207 = vld [vmem:[#allocation2 + $0x68] sm:$0xf]
    %v208 = vld [vmem:[#allocation2 + $0x6c] sm:$0xf]
    %v209 = vld [vmem:[#allocation2 + $0x70] sm:$0xf]
    %v210 = vld [vmem:[#allocation2 + $0x74] sm:$0xf]
    %v211 = vld [vmem:[#allocation2 + $0x78] sm:$0xf]
    %v212 = vld [vmem:[#allocation2 + $0x7c] sm:$0xf]
    %v213 = vld [vmem:[#allocation4] sm:$0xf]
    %v214 = vld [vmem:[#allocation4 + $0x4] sm:$0xf]
    %v215 = vld [vmem:[#allocation4 + $0x8] sm:$0xf]
    %v216 = vld [vmem:[#allocation4 + $0xc] sm:$0xf]
    %v217 = vld [vmem:[#allocation4 + $0x10] sm:$0xf]
    %v218 = vld [vmem:[#allocation4 + $0x14] sm:$0xf]
    %v219 = vld [vmem:[#allocation4 + $0x18] sm:$0xf]
    %v220 = vld [vmem:[#allocation4 + $0x1c] sm:$0xf]
    %v221 = vld [vmem:[#allocation4 + $0x20] sm:$0xf]
    %v222 = vld [vmem:[#allocation4 + $0x24] sm:$0xf]
    %v223 = vld [vmem:[#allocation4 + $0x28] sm:$0xf]
    %v224 = vld [vmem:[#allocation4 + $0x2c] sm:$0xf]
    %v225 = vld [vmem:[#allocation4 + $0x30] sm:$0xf]
    %v226 = vld [vmem:[#allocation4 + $0x34] sm:$0xf]
    %v227 = vld [vmem:[#allocation4 + $0x38] sm:$0xf]
    %v228 = vld [vmem:[#allocation4 + $0x3c] sm:$0xf]
    %v229 = vld [vmem:[#allocation4 + $0x40] sm:$0xf]
    %v230 = vld [vmem:[#allocation4 + $0x44] sm:$0xf]
    %v231 = vld [vmem:[#allocation4 + $0x48] sm:$0xf]
    %v232 = vld [vmem:[#allocation4 + $0x4c] sm:$0xf]
    %v233 = vld [vmem:[#allocation4 + $0x50] sm:$0xf]
    %v234 = vld [vmem:[#allocation4 + $0x54] sm:$0xf]
    %v235 = vld [vmem:[#allocation4 + $0x58] sm:$0xf]
    %v236 = vld [vmem:[#allocation4 + $0x5c] sm:$0xf]
    %v237 = vld [vmem:[#allocation4 + $0x60] sm:$0xf]
    %v238 = vld [vmem:[#allocation4 + $0x64] sm:$0xf]
    %v239 = vld [vmem:[#allocation4 + $0x68] sm:$0xf]
    %v240 = vld [vmem:[#allocation4 + $0x6c] sm:$0xf]
    %v241 = vld [vmem:[#allocation4 + $0x70] sm:$0xf]
    %v242 = vld [vmem:[#allocation4 + $0x74] sm:$0xf]
    %v243 = vld [vmem:[#allocation4 + $0x78] sm:$0xf]
    %v244 = vld [vmem:[#allocation4 + $0x7c] sm:$0xf]
    %v247 = vunpack.c.l.b16 %v179
    %v248 = vunpack.c.h.b16 %v179
    %v249 = vunpack.c.l.b16 %v180
    %v250 = vunpack.c.h.b16 %v180
    %v251 = vpack.c.b16 %v249, %v247
    %v252 = vpack.c.b16 %v250, %v248
    %v287 = vunpack.c.l.b16 %v213
    %v288 = vunpack.c.l.b16 %v214
    %v289 = vunpack.c.l.b16 %v215
    %v290 = vunpack.c.l.b16 %v216
    %v291 = vunpack.c.l.b16 %v217
    %v292 = vunpack.c.l.b16 %v218
    %v293 = vunpack.c.l.b16 %v219
    %v294 = vunpack.c.l.b16 %v220
    %v295 = vunpack.c.l.b16 %v221
    %v296 = vunpack.c.l.b16 %v222
    %v297 = vunpack.c.l.b16 %v223
    %v298 = vunpack.c.l.b16 %v224
    %v299 = vunpack.c.l.b16 %v225
    %v300 = vunpack.c.l.b16 %v226
    %v301 = vunpack.c.l.b16 %v227
    %v302 = vunpack.c.l.b16 %v228
    %v303 = vunpack.c.l.b16 %v229
    %v304 = vunpack.c.l.b16 %v230
    %v305 = vunpack.c.l.b16 %v231
    %v306 = vunpack.c.l.b16 %v232
    %v307 = vunpack.c.l.b16 %v233
    %v308 = vunpack.c.l.b16 %v234
    %v309 = vunpack.c.l.b16 %v235
    %v310 = vunpack.c.l.b16 %v236
    %v311 = vunpack.c.l.b16 %v237
    %v312 = vunpack.c.l.b16 %v238
    %v313 = vunpack.c.l.b16 %v239
    %v314 = vunpack.c.l.b16 %v240
    %v315 = vunpack.c.l.b16 %v241
    %v316 = vunpack.c.l.b16 %v242
    %v317 = vunpack.c.l.b16 %v243
    %v318 = vunpack.c.l.b16 %v244
    %v319 = vpack.c.b16 %v288, %v287
    %v320 = vpack.c.b16 %v290, %v289
    %v321 = vpack.c.b16 %v292, %v291
    %v322 = vpack.c.b16 %v294, %v293
    %v323 = vpack.c.b16 %v296, %v295
    %v324 = vpack.c.b16 %v298, %v297
    %v325 = vpack.c.b16 %v300, %v299
    %v326 = vpack.c.b16 %v302, %v301
    %v327 = vpack.c.b16 %v304, %v303
    %v328 = vpack.c.b16 %v306, %v305
    %v329 = vpack.c.b16 %v308, %v307
    %v330 = vpack.c.b16 %v310, %v309
    %v331 = vpack.c.b16 %v312, %v311
    %v332 = vpack.c.b16 %v314, %v313
    %v333 = vpack.c.b16 %v316, %v315
    %v334 = vpack.c.b16 %v318, %v317
    %351 = vmatprep.subr.bf16.mxu0 0
    %352 = vmatpush1.bf16.msra.mxu0 %v326
    %353 = vmatprep.subr.bf16.mxu0 0
    %354 = vmatpush1.bf16.msra.mxu0 %v325
    %355 = vmatprep.subr.bf16.mxu0 0
    %356 = vmatpush1.bf16.msra.mxu0 %v324
    %357 = vmatprep.subr.bf16.mxu0 0
    %358 = vmatpush1.bf16.msra.mxu0 %v323
    %359 = vmatprep.subr.bf16.mxu0 0
    %360 = vmatpush1.bf16.msra.mxu0 %v322
    %361 = vmatprep.subr.bf16.mxu0 0
    %362 = vmatpush1.bf16.msra.mxu0 %v321
    %363 = vmatprep.subr.bf16.mxu0 0
    %364 = vmatpush1.bf16.msra.mxu0 %v320
    %365 = vmatprep.subr.bf16.mxu0 0
    %366 = vmatpush1.bf16.msra.mxu0 %v319
    %367 = vmatprep.subr.bf16.mxu0 0
    %368 = vmatpush2.bf16.msra.mxu0 %v334
    %369 = vmatprep.subr.bf16.mxu0 0
    %370 = vmatpush2.bf16.msra.mxu0 %v333
    %371 = vmatprep.subr.bf16.mxu0 0
    %372 = vmatpush2.bf16.msra.mxu0 %v332
    %373 = vmatprep.subr.bf16.mxu0 0
    %374 = vmatpush2.bf16.msra.mxu0 %v331
    %375 = vmatprep.subr.bf16.mxu0 0
    %376 = vmatpush2.bf16.msra.mxu0 %v330
    %377 = vmatprep.subr.bf16.mxu0 0
    %378 = vmatpush2.bf16.msra.mxu0 %v329
    %379 = vmatprep.subr.bf16.mxu0 0
    %380 = vmatpush2.bf16.msra.mxu0 %v328
    %381 = vmatprep.subr.bf16.mxu0 0
    %382 = vmatpush2.bf16.msra.mxu0 %v327
    %383 = vmatprep.mubr.bf16.mxu0 %v252
    %384 = vmatmul.mubr.bf16.gmra.mxu0 %v251
    %v385 = vpop.f32.mrf.mxu0
    %v386 = vadd.f32 0.0, %v385
    %v387 = vpop.f32.mrf.mxu0
    %v388 = vpop.f32.mrf.mxu0
    %v389 = vadd.f32 0.0, %v388
    %v390 = vpop.f32.mrf.mxu0
    %391 = vdwg.mxu0
    %v394 = vunpack.c.l.b16 %v177
    %v395 = vunpack.c.h.b16 %v177
    %v396 = vunpack.c.l.b16 %v178
    %v397 = vunpack.c.h.b16 %v178
    %v398 = vpack.c.b16 %v396, %v394
    %v399 = vpack.c.b16 %v397, %v395
    %v434 = vunpack.c.l.b16 %v181
    %v435 = vunpack.c.l.b16 %v182
    %v436 = vunpack.c.l.b16 %v183
    %v437 = vunpack.c.l.b16 %v184
    %v438 = vunpack.c.l.b16 %v185
    %v439 = vunpack.c.l.b16 %v186
    %v440 = vunpack.c.l.b16 %v187
    %v441 = vunpack.c.l.b16 %v188
    %v442 = vunpack.c.l.b16 %v189
    %v443 = vunpack.c.l.b16 %v190
    %v444 = vunpack.c.l.b16 %v191
    %v445 = vunpack.c.l.b16 %v192
    %v446 = vunpack.c.l.b16 %v193
    %v447 = vunpack.c.l.b16 %v194
    %v448 = vunpack.c.l.b16 %v195
    %v449 = vunpack.c.l.b16 %v196
    %v450 = vunpack.c.l.b16 %v197
    %v451 = vunpack.c.l.b16 %v198
    %v452 = vunpack.c.l.b16 %v199
    %v453 = vunpack.c.l.b16 %v200
    %v454 = vunpack.c.l.b16 %v201
    %v455 = vunpack.c.l.b16 %v202
    %v456 = vunpack.c.l.b16 %v203
    %v457 = vunpack.c.l.b16 %v204
    %v458 = vunpack.c.l.b16 %v205
    %v459 = vunpack.c.l.b16 %v206
    %v460 = vunpack.c.l.b16 %v207
    %v461 = vunpack.c.l.b16 %v208
    %v462 = vunpack.c.l.b16 %v209
    %v463 = vunpack.c.l.b16 %v210
    %v464 = vunpack.c.l.b16 %v211
    %v465 = vunpack.c.l.b16 %v212
    %v466 = vpack.c.b16 %v435, %v434
    %v467 = vpack.c.b16 %v437, %v436
    %v468 = vpack.c.b16 %v439, %v438
    %v469 = vpack.c.b16 %v441, %v440
    %v470 = vpack.c.b16 %v443, %v442
    %v471 = vpack.c.b16 %v445, %v444
    %v472 = vpack.c.b16 %v447, %v446
    %v473 = vpack.c.b16 %v449, %v448
    %v474 = vpack.c.b16 %v451, %v450
    %v475 = vpack.c.b16 %v453, %v452
    %v476 = vpack.c.b16 %v455, %v454
    %v477 = vpack.c.b16 %v457, %v456
    %v478 = vpack.c.b16 %v459, %v458
    %v479 = vpack.c.b16 %v461, %v460
    %v480 = vpack.c.b16 %v463, %v462
    %v481 = vpack.c.b16 %v465, %v464
    %498 = vmatprep.subr.bf16.mxu0 0
    %499 = vmatpush1.bf16.msra.mxu0 %v473
    %500 = vmatprep.subr.bf16.mxu0 0
    %501 = vmatpush1.bf16.msra.mxu0 %v472
    %502 = vmatprep.subr.bf16.mxu0 0
    %503 = vmatpush1.bf16.msra.mxu0 %v471
    %504 = vmatprep.subr.bf16.mxu0 0
    %505 = vmatpush1.bf16.msra.mxu0 %v470
    %506 = vmatprep.subr.bf16.mxu0 0
    %507 = vmatpush1.bf16.msra.mxu0 %v469
    %508 = vmatprep.subr.bf16.mxu0 0
    %509 = vmatpush1.bf16.msra.mxu0 %v468
    %510 = vmatprep.subr.bf16.mxu0 0
    %511 = vmatpush1.bf16.msra.mxu0 %v467
    %512 = vmatprep.subr.bf16.mxu0 0
    %513 = vmatpush1.bf16.msra.mxu0 %v466
    %514 = vmatprep.subr.bf16.mxu0 0
    %515 = vmatpush2.bf16.msra.mxu0 %v481
    %516 = vmatprep.subr.bf16.mxu0 0
    %517 = vmatpush2.bf16.msra.mxu0 %v480
    %518 = vmatprep.subr.bf16.mxu0 0
    %519 = vmatpush2.bf16.msra.mxu0 %v479
    %520 = vmatprep.subr.bf16.mxu0 0
    %521 = vmatpush2.bf16.msra.mxu0 %v478
    %522 = vmatprep.subr.bf16.mxu0 0
    %523 = vmatpush2.bf16.msra.mxu0 %v477
    %524 = vmatprep.subr.bf16.mxu0 0
    %525 = vmatpush2.bf16.msra.mxu0 %v476
    %526 = vmatprep.subr.bf16.mxu0 0
    %527 = vmatpush2.bf16.msra.mxu0 %v475
    %528 = vmatprep.subr.bf16.mxu0 0
    %529 = vmatpush2.bf16.msra.mxu0 %v474
    %530 = vmatprep.mubr.bf16.mxu0 %v399
    %531 = vmatmul.mubr.bf16.gmra.mxu0 %v398
    %v532 = vpop.f32.mrf.mxu0
    %v533 = vadd.f32 %v386, %v532
    %v534 = vpop.f32.mrf.mxu0
    %v535 = vpop.f32.mrf.mxu0
    %v536 = vadd.f32 %v389, %v535
    %v537 = vpop.f32.mrf.mxu0
    %538 = vdwg.mxu0
    %v539 = vld [vmem:[%s5] sm:$0x1]
    %v541 = vlaneseq
    %v542 = vshrl.u32 %v541, 7
    %v543 = vsub.s32 0, %v542
    %v544 = vrot.slane %v539, %v543
    %v546 = vadd.f32 %v533, %v544
    %v547 = vadd.f32 %v536, %v544
    %v548 = vmax.f32 %v546, 0.0
    %v549 = vmax.f32 %v547, 0.0
    %v550 = vpack.c.bf16 %v549, %v548
    %v551 = vld [vmem:[%s6] sm:$0xf]
    %v552 = vld [vmem:[%s6 + $0x4] sm:$0xf]
    %v553 = vld [vmem:[%s6 + $0x8] sm:$0xf]
    %v554 = vld [vmem:[%s6 + $0xc] sm:$0xf]
    %v555 = vld [vmem:[%s6 + $0x10] sm:$0xf]
    %v556 = vld [vmem:[%s6 + $0x14] sm:$0xf]
    %v557 = vld [vmem:[%s6 + $0x18] sm:$0xf]
    %v558 = vld [vmem:[%s6 + $0x1c] sm:$0xf]
    %v559 = vld [vmem:[%s6 + $0x20] sm:$0xf]
    %v560 = vld [vmem:[%s6 + $0x24] sm:$0xf]
    %v561 = vld [vmem:[%s6 + $0x28] sm:$0xf]
    %v562 = vld [vmem:[%s6 + $0x2c] sm:$0xf]
    %v563 = vld [vmem:[%s6 + $0x30] sm:$0xf]
    %v564 = vld [vmem:[%s6 + $0x34] sm:$0xf]
    %v565 = vld [vmem:[%s6 + $0x38] sm:$0xf]
    %v566 = vld [vmem:[%s6 + $0x3c] sm:$0xf]
    %v567 = vld [vmem:[%s7] sm:$0x1]
    %v569 = vlaneseq
    %v570 = vshrl.u32 %v569, 7
    %v571 = vsub.s32 0, %v570
    %v572 = vrot.slane %v567, %v571
    %v590 = vunpack.c.l.b16 %v551
    %v591 = vunpack.c.l.b16 %v552
    %v592 = vunpack.c.l.b16 %v553
    %v593 = vunpack.c.l.b16 %v554
    %v594 = vunpack.c.l.b16 %v555
    %v595 = vunpack.c.l.b16 %v556
    %v596 = vunpack.c.l.b16 %v557
    %v597 = vunpack.c.l.b16 %v558
    %v598 = vunpack.c.l.b16 %v559
    %v599 = vunpack.c.l.b16 %v560
    %v600 = vunpack.c.l.b16 %v561
    %v601 = vunpack.c.l.b16 %v562
    %v602 = vunpack.c.l.b16 %v563
    %v603 = vunpack.c.l.b16 %v564
    %v604 = vunpack.c.l.b16 %v565
    %v605 = vunpack.c.l.b16 %v566
    %v606 = vpack.c.b16 %v591, %v590
    %v607 = vpack.c.b16 %v593, %v592
    %v608 = vpack.c.b16 %v595, %v594
    %v609 = vpack.c.b16 %v597, %v596
    %v610 = vpack.c.b16 %v599, %v598
    %v611 = vpack.c.b16 %v601, %v600
    %v612 = vpack.c.b16 %v603, %v602
    %v613 = vpack.c.b16 %v605, %v604
    %622 = vmatprep.subr.bf16.mxu0 0
    %623 = vmatpush1.bf16.msra.mxu0 %v613
    %624 = vmatprep.subr.bf16.mxu0 0
    %625 = vmatpush1.bf16.msra.mxu0 %v612
    %626 = vmatprep.subr.bf16.mxu0 0
    %627 = vmatpush1.bf16.msra.mxu0 %v611
    %628 = vmatprep.subr.bf16.mxu0 0
    %629 = vmatpush1.bf16.msra.mxu0 %v610
    %630 = vmatprep.subr.bf16.mxu0 0
    %631 = vmatpush1.bf16.msra.mxu0 %v609
    %632 = vmatprep.subr.bf16.mxu0 0
    %633 = vmatpush1.bf16.msra.mxu0 %v608
    %634 = vmatprep.subr.bf16.mxu0 0
    %635 = vmatpush1.bf16.msra.mxu0 %v607
    %636 = vmatprep.subr.bf16.mxu0 0
    %637 = vmatpush1.bf16.msra.mxu0 %v606
    %638 = vmatprep.subr.bf16.mxu0 0
    %639 = vmatpush2.bf16.msra.mxu0 0
    %640 = vmatprep.subr.bf16.mxu0 0
    %641 = vmatpush2.bf16.msra.mxu0 0
    %642 = vmatprep.subr.bf16.mxu0 0
    %643 = vmatpush2.bf16.msra.mxu0 0
    %644 = vmatprep.subr.bf16.mxu0 0
    %645 = vmatpush2.bf16.msra.mxu0 0
    %646 = vmatprep.subr.bf16.mxu0 0
    %647 = vmatpush2.bf16.msra.mxu0 0
    %648 = vmatprep.subr.bf16.mxu0 0
    %649 = vmatpush2.bf16.msra.mxu0 0
    %650 = vmatprep.subr.bf16.mxu0 0
    %651 = vmatpush2.bf16.msra.mxu0 0
    %652 = vmatprep.subr.bf16.mxu0 0
    %653 = vmatpush2.bf16.msra.mxu0 0
    %654 = vmatprep.mubr.bf16.mxu0 0
    %655 = vmatmul.mubr.bf16.gmra.mxu0 %v550
    %v656 = vpop.f32.mrf.mxu0
    %v657 = vadd.f32 %v572, %v656
    %v658 = vpop.f32.mrf.mxu0
    %v659 = vpop.f32.mrf.mxu0
    %v660 = vadd.f32 %v572, %v659
    %v661 = vpop.f32.mrf.mxu0
    %662 = vdwg.mxu0
    %v663 = vmax.f32 %v657, 0.0
    %v664 = vmax.f32 %v660, 0.0
    %v665 = vpack.c.bf16 %v664, %v663
    %v666 = vld [vmem:[#allocation6] sm:$0xf]
    %v667 = vld [vmem:[#allocation6 + $0x4] sm:$0xf]
    %v668 = vld [vmem:[#allocation6 + $0x8] sm:$0xf]
    %v669 = vld [vmem:[#allocation6 + $0xc] sm:$0xf]
    %v670 = vld [vmem:[#allocation6 + $0x10] sm:$0xf]
    %v671 = vld [vmem:[#allocation6 + $0x14] sm:$0xf]
    %v672 = vld [vmem:[#allocation6 + $0x18] sm:$0xf]
    %v673 = vld [vmem:[#allocation6 + $0x1c] sm:$0xf]
    %v674 = vld [vmem:[#allocation6 + $0x20] sm:$0xf]
    %v675 = vld [vmem:[#allocation6 + $0x24] sm:$0xf]
    %v676 = vld [vmem:[#allocation6 + $0x28] sm:$0xf]
    %v677 = vld [vmem:[#allocation6 + $0x2c] sm:$0xf]
    %v678 = vld [vmem:[#allocation6 + $0x30] sm:$0xf]
    %v679 = vld [vmem:[#allocation6 + $0x34] sm:$0xf]
    %v680 = vld [vmem:[#allocation6 + $0x38] sm:$0xf]
    %v681 = vld [vmem:[#allocation6 + $0x3c] sm:$0xf]
    %v682 = vld [vmem:[%s9] sm:$0x1]
    %v684 = vlaneseq
    %v685 = vshrl.u32 %v684, 7
    %v686 = vsub.s32 0, %v685
    %v687 = vrot.slane %v682, %v686
    %v705 = vunpack.c.l.b16 %v666
    %v706 = vunpack.c.l.b16 %v667
    %v707 = vunpack.c.l.b16 %v668
    %v708 = vunpack.c.l.b16 %v669
    %v709 = vunpack.c.l.b16 %v670
    %v710 = vunpack.c.l.b16 %v671
    %v711 = vunpack.c.l.b16 %v672
    %v712 = vunpack.c.l.b16 %v673
    %v713 = vunpack.c.l.b16 %v674
    %v714 = vunpack.c.l.b16 %v675
    %v715 = vunpack.c.l.b16 %v676
    %v716 = vunpack.c.l.b16 %v677
    %v717 = vunpack.c.l.b16 %v678
    %v718 = vunpack.c.l.b16 %v679
    %v719 = vunpack.c.l.b16 %v680
    %v720 = vunpack.c.l.b16 %v681
    %v721 = vpack.c.b16 %v706, %v705
    %v722 = vpack.c.b16 %v708, %v707
    %v723 = vpack.c.b16 %v710, %v709
    %v724 = vpack.c.b16 %v712, %v711
    %v725 = vpack.c.b16 %v714, %v713
    %v726 = vpack.c.b16 %v716, %v715
    %v727 = vpack.c.b16 %v718, %v717
    %v728 = vpack.c.b16 %v720, %v719
    %737 = vmatprep.subr.bf16.mxu0 0
    %738 = vmatpush1.bf16.msra.mxu0 %v728
    %739 = vmatprep.subr.bf16.mxu0 0
    %740 = vmatpush1.bf16.msra.mxu0 %v727
    %741 = vmatprep.subr.bf16.mxu0 0
    %742 = vmatpush1.bf16.msra.mxu0 %v726
    %743 = vmatprep.subr.bf16.mxu0 0
    %744 = vmatpush1.bf16.msra.mxu0 %v725
    %745 = vmatprep.subr.bf16.mxu0 0
    %746 = vmatpush1.bf16.msra.mxu0 %v724
    %747 = vmatprep.subr.bf16.mxu0 0
    %748 = vmatpush1.bf16.msra.mxu0 %v723
    %749 = vmatprep.subr.bf16.mxu0 0
    %750 = vmatpush1.bf16.msra.mxu0 %v722
    %751 = vmatprep.subr.bf16.mxu0 0
    %752 = vmatpush1.bf16.msra.mxu0 %v721
    %753 = vmatprep.subr.bf16.mxu0 0
    %754 = vmatpush2.bf16.msra.mxu0 0
    %755 = vmatprep.subr.bf16.mxu0 0
    %756 = vmatpush2.bf16.msra.mxu0 0
    %757 = vmatprep.subr.bf16.mxu0 0
    %758 = vmatpush2.bf16.msra.mxu0 0
    %759 = vmatprep.subr.bf16.mxu0 0
    %760 = vmatpush2.bf16.msra.mxu0 0
    %761 = vmatprep.subr.bf16.mxu0 0
    %762 = vmatpush2.bf16.msra.mxu0 0
    %763 = vmatprep.subr.bf16.mxu0 0
    %764 = vmatpush2.bf16.msra.mxu0 0
    %765 = vmatprep.subr.bf16.mxu0 0
    %766 = vmatpush2.bf16.msra.mxu0 0
    %767 = vmatprep.subr.bf16.mxu0 0
    %768 = vmatpush2.bf16.msra.mxu0 0
    %769 = vmatprep.mubr.bf16.mxu0 0
    %770 = vmatmul.mubr.bf16.gmra.mxu0 %v665
    %v771 = vpop.f32.mrf.mxu0
    %v772 = vadd.f32 %v687, %v771
    %v773 = vpop.f32.mrf.mxu0
    %v774 = vpop.f32.mrf.mxu0
    %v775 = vadd.f32 %v687, %v774
    %v776 = vpop.f32.mrf.mxu0
    %777 = vdwg.mxu0
    %778 = vst [vmem:[%s18] sm:$0xff] %v772
    %779 = vst [vmem:[%s18 + $0x8] sm:$0xff] %v775
    %v780 = vld [vmem:[%s2] sm:$0xf]
    %v781 = vld [vmem:[%s2 + $0x4] sm:$0xf]
    %v782 = vunpack.c.l.bf16 %v780
    %v783 = vunpack.c.l.bf16 %v781
    %v784 = vmul.f32 %v772, 0.5
    %v785 = vmul.f32 %v775, 0.5
    %v786 = vmul.f32 %v784, 1.442695
    %v787 = vpow.pop %v786
    %v788 = vmul.f32 %v785, 1.442695
    %v789 = vpow.pop %v788
    %792 = vrot.lane.b32.xlu0 %v787, 64
    %v793 = vpop.permute.xlu0 %792
    %794 = vrot.lane.b32.xlu0 %v789, 64
    %v795 = vpop.permute.xlu0 %794
    %v798 = vmul.f32 %v782, %v793
    %v799 = vmul.f32 %v783, %v795
    %v800 = vadd.f32 %v772, %v798
    %v801 = vadd.f32 %v775, %v799
    %v802 = vpack.c.bf16 %v801, %v800
    %v803 = vld [vmem:[#allocation7] sm:$0xf]
    %v804 = vld [vmem:[#allocation7 + $0x4] sm:$0xf]
    %v805 = vld [vmem:[#allocation7 + $0x8] sm:$0xf]
    %v806 = vld [vmem:[#allocation7 + $0xc] sm:$0xf]
    %v807 = vld [vmem:[#allocation7 + $0x10] sm:$0xf]
    %v808 = vld [vmem:[#allocation7 + $0x14] sm:$0xf]
    %v809 = vld [vmem:[#allocation7 + $0x18] sm:$0xf]
    %v810 = vld [vmem:[#allocation7 + $0x1c] sm:$0xf]
    %v811 = vld [vmem:[#allocation9] sm:$0xf]
    %v812 = vld [vmem:[#allocation9 + $0x4] sm:$0xf]
    %v813 = vld [vmem:[#allocation9 + $0x8] sm:$0xf]
    %v814 = vld [vmem:[#allocation9 + $0xc] sm:$0xf]
    %v815 = vld [vmem:[#allocation9 + $0x10] sm:$0xf]
    %v816 = vld [vmem:[#allocation9 + $0x14] sm:$0xf]
    %v817 = vld [vmem:[#allocation9 + $0x18] sm:$0xf]
    %v818 = vld [vmem:[#allocation9 + $0x1c] sm:$0xf]
    %v819 = vld [vmem:[#allocation9 + $0x20] sm:$0xf]
    %v820 = vld [vmem:[#allocation9 + $0x24] sm:$0xf]
    %v821 = vld [vmem:[#allocation9 + $0x28] sm:$0xf]
    %v822 = vld [vmem:[#allocation9 + $0x2c] sm:$0xf]
    %v823 = vld [vmem:[#allocation9 + $0x30] sm:$0xf]
    %v824 = vld [vmem:[#allocation9 + $0x34] sm:$0xf]
    %v825 = vld [vmem:[#allocation9 + $0x38] sm:$0xf]
    %v826 = vld [vmem:[#allocation9 + $0x3c] sm:$0xf]
    %v827 = vld [vmem:[#allocation9 + $0x40] sm:$0xf]
    %v828 = vld [vmem:[#allocation9 + $0x44] sm:$0xf]
    %v829 = vld [vmem:[#allocation9 + $0x48] sm:$0xf]
    %v830 = vld [vmem:[#allocation9 + $0x4c] sm:$0xf]
    %v831 = vld [vmem:[#allocation9 + $0x50] sm:$0xf]
    %v832 = vld [vmem:[#allocation9 + $0x54] sm:$0xf]
    %v833 = vld [vmem:[#allocation9 + $0x58] sm:$0xf]
    %v834 = vld [vmem:[#allocation9 + $0x5c] sm:$0xf]
    %v835 = vld [vmem:[#allocation9 + $0x60] sm:$0xf]
    %v836 = vld [vmem:[#allocation9 + $0x64] sm:$0xf]
    %v837 = vld [vmem:[#allocation9 + $0x68] sm:$0xf]
    %v838 = vld [vmem:[#allocation9 + $0x6c] sm:$0xf]
    %v839 = vld [vmem:[#allocation9 + $0x70] sm:$0xf]
    %v840 = vld [vmem:[#allocation9 + $0x74] sm:$0xf]
    %v841 = vld [vmem:[#allocation9 + $0x78] sm:$0xf]
    %v842 = vld [vmem:[#allocation9 + $0x7c] sm:$0xf]
    %v875 = vunpack.c.l.b16 %v811
    %v876 = vunpack.c.l.b16 %v812
    %v877 = vunpack.c.l.b16 %v813
    %v878 = vunpack.c.l.b16 %v814
    %v879 = vunpack.c.l.b16 %v815
    %v880 = vunpack.c.l.b16 %v816
    %v881 = vunpack.c.l.b16 %v817
    %v882 = vunpack.c.l.b16 %v818
    %v883 = vunpack.c.l.b16 %v819
    %v884 = vunpack.c.l.b16 %v820
    %v885 = vunpack.c.l.b16 %v821
    %v886 = vunpack.c.l.b16 %v822
    %v887 = vunpack.c.l.b16 %v823
    %v888 = vunpack.c.l.b16 %v824
    %v889 = vunpack.c.l.b16 %v825
    %v890 = vunpack.c.l.b16 %v826
    %v891 = vunpack.c.l.b16 %v827
    %v892 = vunpack.c.l.b16 %v828
    %v893 = vunpack.c.l.b16 %v829
    %v894 = vunpack.c.l.b16 %v830
    %v895 = vunpack.c.l.b16 %v831
    %v896 = vunpack.c.l.b16 %v832
    %v897 = vunpack.c.l.b16 %v833
    %v898 = vunpack.c.l.b16 %v834
    %v899 = vunpack.c.l.b16 %v835
    %v900 = vunpack.c.l.b16 %v836
    %v901 = vunpack.c.l.b16 %v837
    %v902 = vunpack.c.l.b16 %v838
    %v903 = vunpack.c.l.b16 %v839
    %v904 = vunpack.c.l.b16 %v840
    %v905 = vunpack.c.l.b16 %v841
    %v906 = vunpack.c.l.b16 %v842
    %v907 = vpack.c.b16 %v876, %v875
    %v908 = vpack.c.b16 %v878, %v877
    %v909 = vpack.c.b16 %v880, %v879
    %v910 = vpack.c.b16 %v882, %v881
    %v911 = vpack.c.b16 %v884, %v883
    %v912 = vpack.c.b16 %v886, %v885
    %v913 = vpack.c.b16 %v888, %v887
    %v914 = vpack.c.b16 %v890, %v889
    %v915 = vpack.c.b16 %v892, %v891
    %v916 = vpack.c.b16 %v894, %v893
    %v917 = vpack.c.b16 %v896, %v895
    %v918 = vpack.c.b16 %v898, %v897
    %v919 = vpack.c.b16 %v900, %v899
    %v920 = vpack.c.b16 %v902, %v901
    %v921 = vpack.c.b16 %v904, %v903
    %v922 = vpack.c.b16 %v906, %v905
    %939 = vmatprep.subr.bf16.mxu0 0
    %940 = vmatpush1.bf16.msra.mxu0 %v914
    %941 = vmatprep.subr.bf16.mxu0 0
    %942 = vmatpush1.bf16.msra.mxu0 %v913
    %943 = vmatprep.subr.bf16.mxu0 0
    %944 = vmatpush1.bf16.msra.mxu0 %v912
    %945 = vmatprep.subr.bf16.mxu0 0
    %946 = vmatpush1.bf16.msra.mxu0 %v911
    %947 = vmatprep.subr.bf16.mxu0 0
    %948 = vmatpush1.bf16.msra.mxu0 %v910
    %949 = vmatprep.subr.bf16.mxu0 0
    %950 = vmatpush1.bf16.msra.mxu0 %v909
    %951 = vmatprep.subr.bf16.mxu0 0
    %952 = vmatpush1.bf16.msra.mxu0 %v908
    %953 = vmatprep.subr.bf16.mxu0 0
    %954 = vmatpush1.bf16.msra.mxu0 %v907
    %955 = vmatprep.subr.bf16.mxu0 0
    %956 = vmatpush2.bf16.msra.mxu0 %v922
    %957 = vmatprep.subr.bf16.mxu0 0
    %958 = vmatpush2.bf16.msra.mxu0 %v921
    %959 = vmatprep.subr.bf16.mxu0 0
    %960 = vmatpush2.bf16.msra.mxu0 %v920
    %961 = vmatprep.subr.bf16.mxu0 0
    %962 = vmatpush2.bf16.msra.mxu0 %v919
    %963 = vmatprep.subr.bf16.mxu0 0
    %964 = vmatpush2.bf16.msra.mxu0 %v918
    %965 = vmatprep.subr.bf16.mxu0 0
    %966 = vmatpush2.bf16.msra.mxu0 %v917
    %967 = vmatprep.subr.bf16.mxu0 0
    %968 = vmatpush2.bf16.msra.mxu0 %v916
    %969 = vmatprep.subr.bf16.mxu0 0
    %970 = vmatpush2.bf16.msra.mxu0 %v915
    %971 = vmatprep.mubr.bf16.mxu0 %v399
    %972 = vmatmul.mubr.bf16.gmra.mxu0 %v398
    %v973 = vpop.f32.mrf.mxu0
    %v974 = vadd.f32 0.0, %v973
    %v975 = vpop.f32.mrf.mxu0
    %v976 = vpop.f32.mrf.mxu0
    %v977 = vadd.f32 0.0, %v976
    %v978 = vpop.f32.mrf.mxu0
    %979 = vdwg.mxu0
    %v988 = vunpack.c.l.b16 %v803
    %v989 = vunpack.c.l.b16 %v804
    %v990 = vunpack.c.l.b16 %v805
    %v991 = vunpack.c.l.b16 %v806
    %v992 = vunpack.c.l.b16 %v807
    %v993 = vunpack.c.l.b16 %v808
    %v994 = vunpack.c.l.b16 %v809
    %v995 = vunpack.c.l.b16 %v810
    %v996 = vpack.c.b16 %v989, %v988
    %v997 = vpack.c.b16 %v991, %v990
    %v998 = vpack.c.b16 %v993, %v992
    %v999 = vpack.c.b16 %v995, %v994
    %vm1004 = vcmask 523264
    %v1006 = vsel %vm1004, %v802, 0
    %1008 = vmatprep.subr.bf16.mxu0 0
    %1009 = vmatpush1.bf16.msra.mxu0 0
    %1010 = vmatprep.subr.bf16.mxu0 0
    %1011 = vmatpush1.bf16.msra.mxu0 0
    %1012 = vmatprep.subr.bf16.mxu0 0
    %1013 = vmatpush1.bf16.msra.mxu0 0
    %1014 = vmatprep.subr.bf16.mxu0 0
    %1015 = vmatpush1.bf16.msra.mxu0 0
    %1016 = vmatprep.subr.bf16.mxu0 0
    %1017 = vmatpush1.bf16.msra.mxu0 %v999
    %1018 = vmatprep.subr.bf16.mxu0 0
    %1019 = vmatpush1.bf16.msra.mxu0 %v998
    %1020 = vmatprep.subr.bf16.mxu0 0
    %1021 = vmatpush1.bf16.msra.mxu0 %v997
    %1022 = vmatprep.subr.bf16.mxu0 0
    %1023 = vmatpush1.bf16.msra.mxu0 %v996
    %1024 = vmatprep.subr.bf16.mxu0 0
    %1025 = vmatpush2.bf16.msra.mxu0 0
    %1026 = vmatprep.subr.bf16.mxu0 0
    %1027 = vmatpush2.bf16.msra.mxu0 0
    %1028 = vmatprep.subr.bf16.mxu0 0
    %1029 = vmatpush2.bf16.msra.mxu0 0
    %1030 = vmatprep.subr.bf16.mxu0 0
    %1031 = vmatpush2.bf16.msra.mxu0 0
    %1032 = vmatprep.subr.bf16.mxu0 0
    %1033 = vmatpush2.bf16.msra.mxu0 0
    %1034 = vmatprep.subr.bf16.mxu0 0
    %1035 = vmatpush2.bf16.msra.mxu0 0
    %1036 = vmatprep.subr.bf16.mxu0 0
    %1037 = vmatpush2.bf16.msra.mxu0 0
    %1038 = vmatprep.subr.bf16.mxu0 0
    %1039 = vmatpush2.bf16.msra.mxu0 0
    %1040 = vmatprep.mubr.bf16.mxu0 0
    %1041 = vmatmul.mubr.bf16.gmra.mxu0 %v1006
    %v1042 = vpop.f32.mrf.mxu0
    %v1043 = vadd.f32 %v974, %v1042
    %v1044 = vpop.f32.mrf.mxu0
    %v1045 = vpop.f32.mrf.mxu0
    %v1046 = vadd.f32 %v977, %v1045
    %v1047 = vpop.f32.mrf.mxu0
    %1048 = vdwg.mxu0
    %v1049 = vld [vmem:[#allocation10] sm:$0x1]
    %v1051 = vlaneseq
    %v1052 = vshrl.u32 %v1051, 7
    %v1053 = vsub.s32 0, %v1052
    %v1054 = vrot.slane %v1049, %v1053
    %v1056 = vadd.f32 %v1043, %v1054
    %v1057 = vadd.f32 %v1046, %v1054
    %v1058 = vmax.f32 %v1056, 0.0
    %v1059 = vmax.f32 %v1057, 0.0
    %v1060 = vpack.c.bf16 %v1059, %v1058
    %v1061 = vld [vmem:[#allocation12] sm:$0xf]
    %v1062 = vld [vmem:[#allocation12 + $0x4] sm:$0xf]
    %v1063 = vld [vmem:[#allocation12 + $0x8] sm:$0xf]
    %v1064 = vld [vmem:[#allocation12 + $0xc] sm:$0xf]
    %v1065 = vld [vmem:[#allocation12 + $0x10] sm:$0xf]
    %v1066 = vld [vmem:[#allocation12 + $0x14] sm:$0xf]
    %v1067 = vld [vmem:[#allocation12 + $0x18] sm:$0xf]
    %v1068 = vld [vmem:[#allocation12 + $0x1c] sm:$0xf]
    %v1069 = vld [vmem:[#allocation12 + $0x20] sm:$0xf]
    %v1070 = vld [vmem:[#allocation12 + $0x24] sm:$0xf]
    %v1071 = vld [vmem:[#allocation12 + $0x28] sm:$0xf]
    %v1072 = vld [vmem:[#allocation12 + $0x2c] sm:$0xf]
    %v1073 = vld [vmem:[#allocation12 + $0x30] sm:$0xf]
    %v1074 = vld [vmem:[#allocation12 + $0x34] sm:$0xf]
    %v1075 = vld [vmem:[#allocation12 + $0x38] sm:$0xf]
    %v1076 = vld [vmem:[#allocation12 + $0x3c] sm:$0xf]
    %v1077 = vld [vmem:[#allocation13] sm:$0x1]
    %v1079 = vlaneseq
    %v1080 = vshrl.u32 %v1079, 7
    %v1081 = vsub.s32 0, %v1080
    %v1082 = vrot.slane %v1077, %v1081
    %v1100 = vunpack.c.l.b16 %v1061
    %v1101 = vunpack.c.l.b16 %v1062
    %v1102 = vunpack.c.l.b16 %v1063
    %v1103 = vunpack.c.l.b16 %v1064
    %v1104 = vunpack.c.l.b16 %v1065
    %v1105 = vunpack.c.l.b16 %v1066
    %v1106 = vunpack.c.l.b16 %v1067
    %v1107 = vunpack.c.l.b16 %v1068
    %v1108 = vunpack.c.l.b16 %v1069
    %v1109 = vunpack.c.l.b16 %v1070
    %v1110 = vunpack.c.l.b16 %v1071
    %v1111 = vunpack.c.l.b16 %v1072
    %v1112 = vunpack.c.l.b16 %v1073
    %v1113 = vunpack.c.l.b16 %v1074
    %v1114 = vunpack.c.l.b16 %v1075
    %v1115 = vunpack.c.l.b16 %v1076
    %v1116 = vpack.c.b16 %v1101, %v1100
    %v1117 = vpack.c.b16 %v1103, %v1102
    %v1118 = vpack.c.b16 %v1105, %v1104
    %v1119 = vpack.c.b16 %v1107, %v1106
    %v1120 = vpack.c.b16 %v1109, %v1108
    %v1121 = vpack.c.b16 %v1111, %v1110
    %v1122 = vpack.c.b16 %v1113, %v1112
    %v1123 = vpack.c.b16 %v1115, %v1114
    %1132 = vmatprep.subr.bf16.mxu0 0
    %1133 = vmatpush1.bf16.msra.mxu0 %v1123
    %1134 = vmatprep.subr.bf16.mxu0 0
    %1135 = vmatpush1.bf16.msra.mxu0 %v1122
    %1136 = vmatprep.subr.bf16.mxu0 0
    %1137 = vmatpush1.bf16.msra.mxu0 %v1121
    %1138 = vmatprep.subr.bf16.mxu0 0
    %1139 = vmatpush1.bf16.msra.mxu0 %v1120
    %1140 = vmatprep.subr.bf16.mxu0 0
    %1141 = vmatpush1.bf16.msra.mxu0 %v1119
    %1142 = vmatprep.subr.bf16.mxu0 0
    %1143 = vmatpush1.bf16.msra.mxu0 %v1118
    %1144 = vmatprep.subr.bf16.mxu0 0
    %1145 = vmatpush1.bf16.msra.mxu0 %v1117
    %1146 = vmatprep.subr.bf16.mxu0 0
    %1147 = vmatpush1.bf16.msra.mxu0 %v1116
    %1148 = vmatprep.subr.bf16.mxu0 0
    %1149 = vmatpush2.bf16.msra.mxu0 0
    %1150 = vmatprep.subr.bf16.mxu0 0
    %1151 = vmatpush2.bf16.msra.mxu0 0
    %1152 = vmatprep.subr.bf16.mxu0 0
    %1153 = vmatpush2.bf16.msra.mxu0 0
    %1154 = vmatprep.subr.bf16.mxu0 0
    %1155 = vmatpush2.bf16.msra.mxu0 0
    %1156 = vmatprep.subr.bf16.mxu0 0
    %1157 = vmatpush2.bf16.msra.mxu0 0
    %1158 = vmatprep.subr.bf16.mxu0 0
    %1159 = vmatpush2.bf16.msra.mxu0 0
    %1160 = vmatprep.subr.bf16.mxu0 0
    %1161 = vmatpush2.bf16.msra.mxu0 0
    %1162 = vmatprep.subr.bf16.mxu0 0
    %1163 = vmatpush2.bf16.msra.mxu0 0
    %1164 = vmatprep.mubr.bf16.mxu0 0
    %1165 = vmatmul.mubr.bf16.gmra.mxu0 %v1060
    %v1166 = vpop.f32.mrf.mxu0
    %v1167 = vadd.f32 %v1082, %v1166
    %v1168 = vpop.f32.mrf.mxu0
    %v1169 = vpop.f32.mrf.mxu0
    %v1170 = vadd.f32 %v1082, %v1169
    %v1171 = vpop.f32.mrf.mxu0
    %1172 = vdwg.mxu0
    %v1173 = vmax.f32 %v1167, 0.0
    %v1174 = vmax.f32 %v1170, 0.0
    %v1175 = vpack.c.bf16 %v1174, %v1173
    %v1176 = vld [vmem:[#allocation15] sm:$0xff]
    %v1177 = vld [vmem:[#allocation15 + $0x8] sm:$0xff]
    %v1178 = vld [vmem:[#allocation15 + $0x10] sm:$0xff]
    %v1179 = vld [vmem:[#allocation15 + $0x18] sm:$0xff]
    %v1180 = vld [vmem:[#allocation15 + $0x20] sm:$0xff]
    %v1181 = vld [vmem:[#allocation15 + $0x28] sm:$0xff]
    %v1182 = vld [vmem:[#allocation15 + $0x30] sm:$0xff]
    %v1183 = vld [vmem:[#allocation15 + $0x38] sm:$0xff]
    %v1184 = vld [vmem:[#allocation15 + $0x40] sm:$0xff]
    %v1185 = vld [vmem:[#allocation15 + $0x48] sm:$0xff]
    %v1186 = vld [vmem:[#allocation15 + $0x50] sm:$0xff]
    %v1187 = vld [vmem:[#allocation15 + $0x58] sm:$0xff]
    %v1188 = vld [vmem:[#allocation15 + $0x60] sm:$0xff]
    %v1189 = vld [vmem:[#allocation15 + $0x68] sm:$0xff]
    %v1190 = vld [vmem:[#allocation15 + $0x70] sm:$0xff]
    %v1191 = vld [vmem:[#allocation15 + $0x78] sm:$0xff]
    %v1192 = vld [vmem:[%s16] sm:$0x3]
    %v1194 = vlaneseq
    %v1195 = vshrl.u32 %v1194, 7
    %v1196 = vsub.s32 0, %v1195
    %v1197 = vrot.slane %v1192, %v1196
    %v1198 = vlaneseq
    %v1199 = vshrl.u32 %v1198, 7
    %v1200 = vsub.s32 1, %v1199
    %v1201 = vrot.slane %v1192, %v1200
    %v1220 = vunpack.c.l.b16 %v1176
    %v1221 = vunpack.c.h.b16 %v1176
    %v1222 = vunpack.c.l.b16 %v1177
    %v1223 = vunpack.c.h.b16 %v1177
    %v1224 = vunpack.c.l.b16 %v1178
    %v1225 = vunpack.c.h.b16 %v1178
    %v1226 = vunpack.c.l.b16 %v1179
    %v1227 = vunpack.c.h.b16 %v1179
    %v1228 = vunpack.c.l.b16 %v1180
    %v1229 = vunpack.c.h.b16 %v1180
    %v1230 = vunpack.c.l.b16 %v1181
    %v1231 = vunpack.c.h.b16 %v1181
    %v1232 = vunpack.c.l.b16 %v1182
    %v1233 = vunpack.c.h.b16 %v1182
    %v1234 = vunpack.c.l.b16 %v1183
    %v1235 = vunpack.c.h.b16 %v1183
    %v1236 = vunpack.c.l.b16 %v1184
    %v1237 = vunpack.c.h.b16 %v1184
    %v1238 = vunpack.c.l.b16 %v1185
    %v1239 = vunpack.c.h.b16 %v1185
    %v1240 = vunpack.c.l.b16 %v1186
    %v1241 = vunpack.c.h.b16 %v1186
    %v1242 = vunpack.c.l.b16 %v1187
    %v1243 = vunpack.c.h.b16 %v1187
    %v1244 = vunpack.c.l.b16 %v1188
    %v1245 = vunpack.c.h.b16 %v1188
    %v1246 = vunpack.c.l.b16 %v1189
    %v1247 = vunpack.c.h.b16 %v1189
    %v1248 = vunpack.c.l.b16 %v1190
    %v1249 = vunpack.c.h.b16 %v1190
    %v1250 = vunpack.c.l.b16 %v1191
    %v1251 = vunpack.c.h.b16 %v1191
    %v1252 = vpack.c.b16 %v1222, %v1220
    %v1253 = vpack.c.b16 %v1223, %v1221
    %v1254 = vpack.c.b16 %v1226, %v1224
    %v1255 = vpack.c.b16 %v1227, %v1225
    %v1256 = vpack.c.b16 %v1230, %v1228
    %v1257 = vpack.c.b16 %v1231, %v1229
    %v1258 = vpack.c.b16 %v1234, %v1232
    %v1259 = vpack.c.b16 %v1235, %v1233
    %v1260 = vpack.c.b16 %v1238, %v1236
    %v1261 = vpack.c.b16 %v1239, %v1237
    %v1262 = vpack.c.b16 %v1242, %v1240
    %v1263 = vpack.c.b16 %v1243, %v1241
    %v1264 = vpack.c.b16 %v1246, %v1244
    %v1265 = vpack.c.b16 %v1247, %v1245
    %v1266 = vpack.c.b16 %v1250, %v1248
    %v1267 = vpack.c.b16 %v1251, %v1249
    %1284 = vmatprep.subr.bf16.mxu0 %v1267
    %1285 = vmatpush1.bf16.msra.mxu0 %v1266
    %1286 = vmatprep.subr.bf16.mxu0 %v1265
    %1287 = vmatpush1.bf16.msra.mxu0 %v1264
    %1288 = vmatprep.subr.bf16.mxu0 %v1263
    %1289 = vmatpush1.bf16.msra.mxu0 %v1262
    %1290 = vmatprep.subr.bf16.mxu0 %v1261
    %1291 = vmatpush1.bf16.msra.mxu0 %v1260
    %1292 = vmatprep.subr.bf16.mxu0 %v1259
    %1293 = vmatpush1.bf16.msra.mxu0 %v1258
    %1294 = vmatprep.subr.bf16.mxu0 %v1257
    %1295 = vmatpush1.bf16.msra.mxu0 %v1256
    %1296 = vmatprep.subr.bf16.mxu0 %v1255
    %1297 = vmatpush1.bf16.msra.mxu0 %v1254
    %1298 = vmatprep.subr.bf16.mxu0 %v1253
    %1299 = vmatpush1.bf16.msra.mxu0 %v1252
    %1300 = vmatprep.subr.bf16.mxu0 0
    %1301 = vmatpush2.bf16.msra.mxu0 0
    %1302 = vmatprep.subr.bf16.mxu0 0
    %1303 = vmatpush2.bf16.msra.mxu0 0
    %1304 = vmatprep.subr.bf16.mxu0 0
    %1305 = vmatpush2.bf16.msra.mxu0 0
    %1306 = vmatprep.subr.bf16.mxu0 0
    %1307 = vmatpush2.bf16.msra.mxu0 0
    %1308 = vmatprep.subr.bf16.mxu0 0
    %1309 = vmatpush2.bf16.msra.mxu0 0
    %1310 = vmatprep.subr.bf16.mxu0 0
    %1311 = vmatpush2.bf16.msra.mxu0 0
    %1312 = vmatprep.subr.bf16.mxu0 0
    %1313 = vmatpush2.bf16.msra.mxu0 0
    %1314 = vmatprep.subr.bf16.mxu0 0
    %1315 = vmatpush2.bf16.msra.mxu0 0
    %1316 = vmatprep.mubr.bf16.mxu0 0
    %1317 = vmatmul.mubr.bf16.gmra.mxu0 %v1175
    %v1318 = vpop.f32.mrf.mxu0
    %v1319 = vadd.f32 %v1197, %v1318
    %v1320 = vpop.f32.mrf.mxu0
    %v1321 = vadd.f32 %v1201, %v1320
    %v1322 = vpop.f32.mrf.mxu0
    %v1323 = vadd.f32 %v1197, %v1322
    %v1324 = vpop.f32.mrf.mxu0
    %v1325 = vadd.f32 %v1201, %v1324
    %1326 = vdwg.mxu0
    %v1327 = vxor.u32 %v1319, 2147483648
    %v1328 = vxor.u32 %v1321, 2147483648
    %v1329 = vxor.u32 %v1323, 2147483648
    %v1330 = vxor.u32 %v1325, 2147483648
    %v1331 = vmul.f32 %v1327, 1.442695
    %v1332 = vpow.pop %v1331
    %v1333 = vmul.f32 %v1328, 1.442695
    %v1334 = vpow.pop %v1333
    %v1335 = vmul.f32 %v1329, 1.442695
    %v1336 = vpow.pop %v1335
    %v1337 = vmul.f32 %v1330, 1.442695
    %v1338 = vpow.pop %v1337
    %v1339 = vadd.f32 %v1332, 1.0
    %v1340 = vadd.f32 %v1334, 1.0
    %v1341 = vadd.f32 %v1336, 1.0
    %v1342 = vadd.f32 %v1338, 1.0
    %v1343 = vrcp.pop %v1339
    %v1344 = vmul.f32 1.0, %v1343
    %v1345 = vrcp.pop %v1340
    %v1346 = vmul.f32 1.0, %v1345
    %v1347 = vrcp.pop %v1341
    %v1348 = vmul.f32 1.0, %v1347
    %v1349 = vrcp.pop %v1342
    %v1350 = vmul.f32 1.0, %v1349
    %1351 = vst [vmem:[%s17] sm:$0xff] %v1344
    %1352 = vst [vmem:[%s17 + $0x8] sm:$0xff] %v1346
    %1353 = vst [vmem:[%s17 + $0x10] sm:$0xff] %v1348
    %1354 = vst [vmem:[%s17 + $0x18] sm:$0xff] %v1350
    // Predicated region
    $region106: #{cvae_forward.1} parent=1 // pred_check
      _
    $region107: #{cvae_forward.1} parent=1 // pred_check_branch
      %1356 = sbr.rel (0) target = $region109
    $region108: #{cvae_forward.1} parent=1 // pred_region
      _
    $region109: #{cvae_forward.1} parent=1 // pred_fallthru
      _
    // Predicated region
    $region110: #{cvae_forward.1} parent=1 // pred_check
      _
    $region111: #{cvae_forward.1} parent=1 // pred_check_branch
      %1358 = sbr.rel (0) target = $region113
    $region112: #{cvae_forward.1} parent=1 // pred_region
      _
    $region113: #{cvae_forward.1} parent=1 // pred_fallthru
      _
    // Predicated region
    $region114: #{cvae_forward.1} parent=1 // pred_check
      _
    $region115: #{cvae_forward.1} parent=1 // pred_check_branch
      %1360 = sbr.rel (0) target = $region117
    $region116: #{cvae_forward.1} parent=1 // pred_region
      _
    $region117: #{cvae_forward.1} parent=1 // pred_fallthru
      _
    // Predicated region
    $region118: #{cvae_forward.1} parent=1 // pred_check
      _
    $region119: #{cvae_forward.1} parent=1 // pred_check_branch
      %1362 = sbr.rel (0) target = $region121
    $region120: #{cvae_forward.1} parent=1 // pred_region
      _
    $region121: #{cvae_forward.1} parent=1 // pred_fallthru
      _
    %1363 = vsyncpa [#allocation3], 1
    %1364 = vsyncpa [#allocation5], 1
    %1365 = vsyncpa [#allocation8], 1
    %1366 = vsyncpa [#allocation11], 1
    %1367 = vsyncpa [#allocation14], 1

</llo_original>
